<compile_context>
chip_gen: v6e
topology: v6e:2x2x1
jax: 0.10.0
libtpu: 0.0.40
codegen_flags: <defaults>
</compile_context>

<pallas_src>
import functools

import jax
import jax.numpy as jnp
from jax.experimental import pallas as pl
from jax.experimental.pallas import tpu as pltpu


def _cdiv(a, b):
    return -(-a // b)


def _sublane(dtype):
    # f32 -> 8, bf16/f16 -> 16, int8/fp8 -> 32 (sub-32-bit packs along sublanes).
    return max(8, 32 // jnp.dtype(dtype).itemsize)


# Keep >= this many grid steps when the array is big enough to split, so both
# v7x TensorCores get work and the DMA pipeline stays primed.
_MIN_PARALLEL_STEPS = 4

# Fast-path gate: flatten (N, C, H*W) -> (N, C*H*W) only while the pre-expanded
# per-channel row (C*H*W elements) stays tiny.
_FLATTEN_CAP_BYTES = 2 * 1024 * 1024


@functools.lru_cache(maxsize=None)
def _vmem_budgets():
    """Generation-aware (x-block budget bytes, vmem_limit_bytes)."""
    try:
        phys = int(pltpu.get_tpu_info().vmem_capacity_bytes)
    except Exception:
        phys = 64 * 1024 * 1024  # conservative fallback (v7x per-TC size)
    if phys >= 100 * 1024 * 1024:      # v5e / v6e: 128 MiB physical
        x_block = 8 * 1024 * 1024
    else:                               # v7x: 64 MiB per TensorCore
        x_block = 4 * 1024 * 1024
    # Live VMEM ~= 2*(in + out) blocks (+ tiny y); leave headroom for scratch.
    vmem_limit = int(min(phys * 3 // 4, 96 * 1024 * 1024))
    return x_block, vmem_limit


def _compiler_params(semantics):
    _, vmem_limit = _vmem_budgets()
    return pltpu.CompilerParams(dimension_semantics=semantics,
                                vmem_limit_bytes=vmem_limit)


def _pick_lane_tile(L, sub_rows, itemsize, budget):
    """Full L if a `sub_rows`-row slab fits the budget, else a 128-multiple tile."""
    if L <= 128 or sub_rows * L * itemsize <= budget:
        return int(L)
    tl = (budget // (sub_rows * itemsize)) // 128 * 128
    return int(max(128, min(tl, L)))


def _pick_row_tile(dim, row_bytes, sub, budget, target_blocks):
    """Largest multiple-of-`sub` (or full-dim) tile along a sublane axis that
    fits the budget; optionally capped so the axis yields >= target_blocks."""
    if dim * row_bytes <= budget:
        tile = dim
    else:
        tile = max(sub, (budget // max(1, row_bytes)) // sub * sub)
        tile = min(tile, dim)
    if target_blocks > 1 and dim > sub:
        cap = max(sub, (dim // target_blocks) // sub * sub)
        tile = min(tile, cap)
    return int(tile)


# ----------------------------------------------------------------------------
# Kernel bodies (pure VPU elementwise; binding resource is HBM DMA).
# ----------------------------------------------------------------------------
def _scale_by_channel_kernel(x_ref, y_ref, o_ref):
    # x_ref: (1, TC, TL) lane-dense slab, y_ref: (TC, 1) per-channel scales.
    o_ref[...] = (x_ref[...] * y_ref[...][None, :, :]).astype(o_ref.dtype)


def _mul_spatial_kernel(x_ref, y_ref, o_ref):
    # x_ref: (1, TC, TL), y_ref: (1, 1, TL) -> broadcasts over the channel dim.
    o_ref[...] = (x_ref[...] * y_ref[...]).astype(o_ref.dtype)


def _mul_2d_kernel(x_ref, y_ref, o_ref):
    o_ref[...] = (x_ref[...] * y_ref[...]).astype(o_ref.dtype)


# ----------------------------------------------------------------------------
# Case 3: x (M, N) * y broadcast over rows (y len N) or columns (y len M)
# ----------------------------------------------------------------------------
def expand_mul_2d(x, y, broadcast_over_rows):
    M, N2 = x.shape
    out_dtype = jnp.result_type(x.dtype, y.dtype)
    itemsize = jnp.dtype(x.dtype).itemsize
    sub = _sublane(x.dtype)
    budget, _ = _vmem_budgets()

    TN = _pick_lane_tile(N2, sub, itemsize, budget)
    grid_n = _cdiv(N2, TN)
    target_m = _cdiv(_MIN_PARALLEL_STEPS, grid_n)
    TM = _pick_row_tile(M, TN * itemsize, sub, budget, target_m)
    grid_m = _cdiv(M, TM)

    if broadcast_over_rows:          # out[m, n] = x[m, n] * y[n]
        y2 = y.reshape(1, N2)
        y_spec = pl.BlockSpec((1, TN), lambda i, j: (0, j))
    else:                            # out[m, n] = x[m, n] * y[m]
        y2 = y.reshape(M, 1)
        # Constant across the inner lane axis -> fetched once per row tile.
        y_spec = pl.BlockSpec((TM, 1), lambda i, j: (i, 0))

    # TODO(synk): if an xprof trace on v7x shows exposed DMA, try
    # pipeline_mode=pl.Buffered(3) on the x in_spec only (measure first).
    return pl.pallas_call(
        _mul_2d_kernel,
        out_shape=jax.ShapeDtypeStruct((M, N2), out_dtype),
        grid=(grid_m, grid_n),
        in_specs=[pl.BlockSpec((TM, TN), lambda i, j: (i, j)), y_spec],
        out_specs=pl.BlockSpec((TM, TN), lambda i, j: (i, j)),
        compiler_params=_compiler_params(("parallel", "parallel")),
    )(x, y2)


# ----------------------------------------------------------------------------
# Case 1: x (N, C, H, W) * y (C,)  -> out[n,c,h,w] = x[n,c,h,w] * y[c]
# ----------------------------------------------------------------------------
def expand_mul_4d_1d(x, y):
    N, C, H, W = x.shape
    L = H * W
    itemsize = jnp.dtype(x.dtype).itemsize
    sub = _sublane(x.dtype)
    budget, _ = _vmem_budgets()

    # Fast path: non-128-aligned spatial extent (7x7, 14x14, ...) would leave
    # most of every stored vreg masked in the slab layout. Flatten channels
    # into the lane axis and pre-expand y once to a tiny (C*L,) row so the 2D
    # row-broadcast kernel gets big, lane-dense blocks.
    if L % 128 != 0 and C * L * itemsize <= _FLATTEN_CAP_BYTES:
        y_row = jnp.repeat(y, L)                      # y_row[c*L + p] = y[c]
        out = expand_mul_2d(x.reshape(N, C * L), y_row, broadcast_over_rows=True)
        return out.reshape(N, C, H, W)

    TL = _pick_lane_tile(L, sub, itemsize, budget)
    grid_l = _cdiv(L, TL)
    target_c = _cdiv(_MIN_PARALLEL_STEPS, N * grid_l)
    TC = _pick_row_tile(C, TL * itemsize, sub, budget, target_c)
    grid_c = _cdiv(C, TC)

    x3 = x.reshape(N, C, L)          # free view: contiguous NCHW -> (N, C, HW)
    y2 = y.reshape(C, 1)
    out_dtype = jnp.result_type(x.dtype, y.dtype)
    # Channel axis outermost so the (TC, 1) scale block index is constant
    # across the inner (batch, lane) axes and is not re-DMA'd every step.
    out = pl.pallas_call(
        _scale_by_channel_kernel,
        out_shape=jax.ShapeDtypeStruct((N, C, L), out_dtype),
        grid=(grid_c, N, grid_l),
        in_specs=[
            pl.BlockSpec((1, TC, TL), lambda c, n, l: (n, c, l)),
            pl.BlockSpec((TC, 1), lambda c, n, l: (c, 0)),
        ],
        out_specs=pl.BlockSpec((1, TC, TL), lambda c, n, l: (n, c, l)),
        compiler_params=_compiler_params(("parallel", "parallel", "parallel")),
    )(x3, y2)
    return out.reshape(N, C, H, W)


# ----------------------------------------------------------------------------
# Case 2: x (N, C, H, W) * y (N, Hy, Wy), y centre-cropped to (N, H, W)
# ----------------------------------------------------------------------------
def expand_mul_4d_3d(x, y):
    N, C, H, W = x.shape
    Hy, Wy = y.shape[1], y.shape[2]
    if Hy < H or Wy < W:
        raise ValueError(
            f"y spatial dims {(Hy, Wy)} must be >= x spatial dims {(H, W)} "
            "for the centre crop.")
    dh = (Hy - H) // 2
    dw = (Wy - W) // 2
    L = H * W
    itemsize = jnp.dtype(x.dtype).itemsize
    sub = _sublane(x.dtype)
    budget, _ = _vmem_budgets()
    out_dtype = jnp.result_type(x.dtype, y.dtype)

    # Centre-crop y. When no crop is needed this is a free reshape; otherwise
    # it is one extra XLA pass over y (y is C-times smaller than x).
    # TODO(synk): for very small C, fuse the crop into the y BlockSpec via
    # pl.Element offsets on the un-reshaped (N, Hy, Wy) array to skip the pass.
    if dh == 0 and dw == 0:
        y_c = y.reshape(N, 1, L)
    else:
        y_c = y[:, dh:dh + H, dw:dw + W].reshape(N, 1, L)

    TL = _pick_lane_tile(L, sub, itemsize, budget)
    grid_l = _cdiv(L, TL)
    target_c = _cdiv(_MIN_PARALLEL_STEPS, N * grid_l)
    TC = _pick_row_tile(C, TL * itemsize, sub, budget, target_c)
    grid_c = _cdiv(C, TC)

    x3 = x.reshape(N, C, L)
    # Channel axis innermost so the per-batch y row block index is constant
    # across the inner axis and is fetched once per (batch, lane tile).
    out = pl.pallas_call(
        _mul_spatial_kernel,
        out_shape=jax.ShapeDtypeStruct((N, C, L), out_dtype),
        grid=(N, grid_l, grid_c),
        in_specs=[
            pl.BlockSpec((1, TC, TL), lambda n, l, c: (n, c, l)),
            pl.BlockSpec((1, 1, TL), lambda n, l, c: (n, 0, l)),
        ],
        out_specs=pl.BlockSpec((1, TC, TL), lambda n, l, c: (n, c, l)),
        compiler_params=_compiler_params(("parallel", "parallel", "parallel")),
    )(x3, y_c)
    return out.reshape(N, C, H, W)


# ----------------------------------------------------------------------------
# Dispatcher reproducing ExpandAndMultiply.forward semantics (shape-static).
# ----------------------------------------------------------------------------
def expand_and_multiply(x, y):
    s, t = x.shape, y.shape
    if len(s) == 4:
        if len(t) == 1:
            return expand_mul_4d_1d(x, y)
        if len(t) == 3:
            return expand_mul_4d_3d(x, y)
    elif len(s) == 2:
        # Mirrors the PyTorch branch precedence exactly: row-broadcast wins
        # whenever x.shape[1] == y.shape[0] (including square x).
        if x.shape[1] == y.shape[0]:
            return expand_mul_2d(x, y, broadcast_over_rows=True)
        return expand_mul_2d(x, y, broadcast_over_rows=False)
    # Matches the PyTorch module's fall-through: unrecognized shape combos
    # return x unchanged.
    return x


if __name__ == "__main__":
    key = jax.random.PRNGKey(0)
    ks = jax.random.split(key, 8)

    # Case 1: 4D x, 1D y (per-channel scale), lane-dense slab path (H*W = 256).
    x4 = jax.random.normal(ks[0], (2, 4, 16, 16), dtype=jnp.float32)
    y1 = jax.random.normal(ks[1], (4,), dtype=jnp.float32)
    out1 = jax.block_until_ready(expand_and_multiply(x4, y1))
    ref1 = x4 * y1[None, :, None, None]
    assert jnp.allclose(out1, ref1, atol=1e-6), "case 4D*1D mismatch"

    # Case 1b: odd spatial extent (7x7) -> flattened (N, C*H*W) fast path.
    x4o = jax.random.normal(ks[2], (2, 4, 7, 7), dtype=jnp.float32)
    out1b = jax.block_until_ready(expand_and_multiply(x4o, y1))
    ref1b = x4o * y1[None, :, None, None]
    assert jnp.allclose(out1b, ref1b, atol=1e-6), "case 4D*1D (odd L) mismatch"

    # Case 1c: mixed dtype (bf16 x, f32 y) -> f32 output (PyTorch promotion).
    xbf = x4.astype(jnp.bfloat16)
    out1c = jax.block_until_ready(expand_and_multiply(xbf, y1))
    ref1c = xbf.astype(jnp.float32) * y1[None, :, None, None]
    assert out1c.dtype == jnp.float32, "mixed-dtype promotion mismatch"
    assert jnp.allclose(out1c, ref1c, atol=1e-6), "case mixed-dtype mismatch"

    # Case 2: 4D x, 3D y (per-batch spatial map, centre-cropped 20x20 -> 16x16).
    y3 = jax.random.normal(ks[3], (2, 20, 20), dtype=jnp.float32)
    out2 = jax.block_until_ready(expand_and_multiply(x4, y3))
    ref2 = x4 * y3[:, 2:18, 2:18][:, None, :, :]
    assert jnp.allclose(out2, ref2, atol=1e-6), "case 4D*3D mismatch"

    # Case 3a: 2D x, y matches last dim (row-wise broadcast).
    x2 = jax.random.normal(ks[4], (8, 32), dtype=jnp.float32)
    yr = jax.random.normal(ks[5], (32,), dtype=jnp.float32)
    out3 = jax.block_until_ready(expand_and_multiply(x2, yr))
    assert jnp.allclose(out3, x2 * yr[None, :], atol=1e-6), "case 2D row mismatch"

    # Case 3b: 2D x, y matches first dim (column-wise broadcast).
    yc = jax.random.normal(ks[6], (8,), dtype=jnp.float32)
    out4 = jax.block_until_ready(expand_and_multiply(x2, yc))
    assert jnp.allclose(out4, x2 * yc[:, None], atol=1e-6), "case 2D col mismatch"

    print("KERNEL_OK")
</pallas_src>

<mosaic_0001>
module attributes {stable_mosaic.version = 11 : i64} {
  func.func @_scale_by_channel_kernel(%arg0: i32, %arg1: i32, %arg2: i32, %arg3: memref<1x4x256xf32, #tpu.memory_space<vmem>>, %arg4: memref<4x1xf32, #tpu.memory_space<vmem>>, %arg5: memref<1x4x256xf32, #tpu.memory_space<vmem>>) attributes {dimension_semantics = [#tpu.dimension_semantics<parallel>, #tpu.dimension_semantics<parallel>, #tpu.dimension_semantics<parallel>], iteration_bounds = array<i64: 1, 2, 1>, scalar_prefetch = 0 : i64, scratch_operands = 0 : i64, tpu.core_type = #tpu.core_type<tc>, window_params = [{transform_indices = @transform_0, window_bounds = array<i64: 1, 4, 256>}, {transform_indices = @transform_1, window_bounds = array<i64: 4, 1>}, {transform_indices = @transform_2, window_bounds = array<i64: 1, 4, 256>}]} {
    %c0 = arith.constant 0 : index
    %c0_0 = arith.constant 0 : index
    %c0_1 = arith.constant 0 : index
    %0 = vector.load %arg3[%c0, %c0_0, %c0_1] : memref<1x4x256xf32, #tpu.memory_space<vmem>>, vector<1x4x256xf32>
    %c0_2 = arith.constant 0 : index
    %c0_3 = arith.constant 0 : index
    %1 = vector.load %arg4[%c0_2, %c0_3] : memref<4x1xf32, #tpu.memory_space<vmem>>, vector<4x1xf32>
    %2 = vector.shape_cast %1 : vector<4x1xf32> to vector<1x4x1xf32>
    %3 = vector.broadcast %2 : vector<1x4x1xf32> to vector<1x4x256xf32>
    %4 = arith.mulf %0, %3 : vector<1x4x256xf32>
    %c0_4 = arith.constant 0 : index
    %c0_5 = arith.constant 0 : index
    %c0_6 = arith.constant 0 : index
    %5 = vector.load %arg5[%c0_4, %c0_5, %c0_6] : memref<1x4x256xf32, #tpu.memory_space<vmem>>, vector<1x4x256xf32>
    tpu.vector_store %arg5[%c0_4, %c0_5, %c0_6], %4 {strides = array<i32>} : memref<1x4x256xf32, #tpu.memory_space<vmem>>, vector<1x4x256xf32>,
    return
  }
  func.func @transform_0(%arg0: i32, %arg1: i32, %arg2: i32) -> (i32, i32, i32) {
    %c0_i32 = arith.constant 0 : i32
    return %arg1, %arg0, %arg2 : i32, i32, i32
  }
  func.func @transform_1(%arg0: i32, %arg1: i32, %arg2: i32) -> (i32, i32) {
    %c0_i32 = arith.constant 0 : i32
    %c0_i32_0 = arith.constant 0 : i32
    return %arg0, %c0_i32 : i32, i32
  }
  func.func @transform_2(%arg0: i32, %arg1: i32, %arg2: i32) -> (i32, i32, i32) {
    %c0_i32 = arith.constant 0 : i32
    return %arg1, %arg0, %arg2 : i32, i32, i32
  }
}

</mosaic_0001>

<llo_original>
// kernel: tpu_custom_call.1
$region0: #{tpu_custom_call.1}
  #allocation0 [shape = 'u32[]', space=smem, size = 0x4, offset = 0x4, fixed_abs, tag = 'smem constant byte address 0x4 - core index']
  #allocation1 [shape = 'u32[144,128]{1,0:T(1,128)}', space=vmem, size = 0x12000, scoped, tag = 'internal scratch']
  %s0 = inlined_call_operand.hbm [shape: f32[2,4,256], index: 0, kind: input, shape index: {}]
  %s1 = inlined_call_operand.vmem [shape: f32[4,1], index: 1, kind: input, shape index: {}]
  %s2 = inlined_call_operand.hbm [shape: f32[2,4,256], index: 2, kind: output, shape index: {}]
  %s3 = sld [smem:[#allocation0]]
  $region45: #{tpu_custom_call.1} parent=0
    _
  %s5 = ssub.s32 1, %s3
  %s6 = scalar_select 0, %s5, %s3
  $region1: #{tpu_custom_call.1} parent=0
    #allocation2 [shape = 'u8[8192]{0}', space=vmem, size = 0x2000, scoped, tag = 'input window, operand 0']
    #allocation3 [shape = 's32[2]{0}', space=sflag, size = 0x8, scoped, tag = 'scoped memory for tpu_custom_call.1']
    #allocation4 [shape = 's32[2]{0}', space=sflag, size = 0x8, scoped, tag = 'scoped memory for tpu_custom_call.1']
    #allocation5 [shape = 'u8[8192]{0}', space=vmem, size = 0x2000, scoped, tag = 'output window, operand 0']
    %7 = vsyncpa [#allocation3], 0
    %s8 = scalar_lea.sflag [#allocation3], 1
    %9 = vsyncpa %s8, 0
    %10 = vsyncpa [#allocation4], 0
    %s11 = scalar_lea.sflag [#allocation4], 1
    %12 = vsyncpa %s11, 0
    loop: start=0, step=1, limit=4
    $region2: #{tpu_custom_call.1} parent=1 // loop_pre_header
      _
    $region3: #{tpu_custom_call.1} parent=1 // loop_header
      %s14 = sphi 0, %s18
      %p15 = scmp.ge.s32.totalorder %s14, 4
      %s21 = sphi 0, %s40
      %s22 = sphi 0, %s36
      %s23 = sphi 0, %s32
      %s24 = sphi 0, %s21
      %s25 = sphi 0, %s22
      %s26 = sphi 0, %s23
      %s27 = sphi 0, %s24
      %s28 = sphi 0, %s25
      %s29 = sphi 0, %s26
      %s47 = sphi 0, %s49
      %s50 = sphi 0, %s47
      %s51 = sphi 0, %s50
      %s67 = sphi 0, %s51
      %s73 = sphi 0, %s75
      %s76 = sphi 0, %s73
      %s77 = sphi 0, %s76
      %s93 = sphi 0, %s77
      %s103 = sphi 0, %s105
      %s106 = sphi 0, %s103
      %s107 = sphi 0, %s106
      %s123 = sphi 0, %s107
    $region4: #{tpu_custom_call.1} parent=1 // loop_header_branch
      %17 = sbr.rel (%p15) target = $region8
    $region5: #{tpu_custom_call.1} parent=1 // loop_body
      %s19 = ssub.s32 %s14, 1
      %s20 = ssub.s32 %s14, 2
      %s30 = sadd.s32 1, %s23
      %p31 = scmp.ge.s32.totalorder %s30, 1
      %s32 = scalar_select %p31, 0, %s30
      %s33 = sadd.s32 1, %s22
      %s34 = scalar_select %p31, %s33, %s22
      %p35 = scmp.ge.s32.totalorder %s34, 2
      %s36 = scalar_select %p35, 0, %s34
      %s37 = sadd.s32 1, %s21
      %s38 = scalar_select %p35, %s37, %s21
      %p39 = scmp.ge.s32.totalorder %s38, 1
      %s40 = scalar_select %p39, 0, %s38
      %s41 = ssub.s32 %s22, %s36
      %s42 = ssub.s32 %s21, %s40
      %s43 = sor.u32 %s41, %s42
      %s44 = ssub.s32 %s23, %s32
      %s45 = sor.u32 %s43, %s44
      %p46 = scmp.eq.s32.totalorder %s45, 0
      %s48 = sadd.s32 %s47, 1
      %s49 = scalar_select %p46, %s47, %s48
      %p52 = pneg %p46
      %p53 = scmp.eq.s32.totalorder %s14, 1
      %p54 = por %p52, %p53
      %p55 = scmp.ne.s32.totalorder %s47, %s50
      %p56 = scmp.eq.s32.totalorder %s14, 0
      %p57 = por %p55, %p56
      %p58 = scmp.ne.s32.totalorder %s47, %s50
      %p59 = scmp.eq.s32.totalorder %s19, 1
      %p60 = por %p58, %p59
      %p61 = scmp.ne.s32.totalorder %s50, %s51
      %p62 = scmp.eq.s32.totalorder %s19, 0
      %p63 = por %p61, %p62
      %p64 = scmp.ne.s32.totalorder %s50, %s51
      %p65 = scmp.eq.s32.totalorder %s20, 1
      %p66 = por %p64, %p65
      %p68 = scmp.ne.s32.totalorder %s51, %s67
      %p69 = scmp.eq.s32.totalorder %s20, 0
      %p70 = por %p68, %p69
      %s71 = ssub.s32 %s21, %s40
      %p72 = scmp.eq.s32.totalorder %s71, 0
      %s74 = sadd.s32 %s73, 1
      %s75 = scalar_select %p72, %s73, %s74
      %p78 = pneg %p72
      %p79 = scmp.eq.s32.totalorder %s14, 1
      %p80 = por %p78, %p79
      %p81 = scmp.ne.s32.totalorder %s73, %s76
      %p82 = scmp.eq.s32.totalorder %s14, 0
      %p83 = por %p81, %p82
      %p84 = scmp.ne.s32.totalorder %s73, %s76
      %p85 = scmp.eq.s32.totalorder %s19, 1
      %p86 = por %p84, %p85
      %p87 = scmp.ne.s32.totalorder %s76, %s77
      %p88 = scmp.eq.s32.totalorder %s19, 0
      %p89 = por %p87, %p88
      %p90 = scmp.ne.s32.totalorder %s76, %s77
      %p91 = scmp.eq.s32.totalorder %s20, 1
      %p92 = por %p90, %p91
      %p94 = scmp.ne.s32.totalorder %s77, %s93
      %p95 = scmp.eq.s32.totalorder %s20, 0
      %p96 = por %p94, %p95
      %s97 = ssub.s32 %s22, %s36
      %s98 = ssub.s32 %s21, %s40
      %s99 = sor.u32 %s97, %s98
      %s100 = ssub.s32 %s23, %s32
      %s101 = sor.u32 %s99, %s100
      %p102 = scmp.eq.s32.totalorder %s101, 0
      %s104 = sadd.s32 %s103, 1
      %s105 = scalar_select %p102, %s103, %s104
      %p108 = pneg %p102
      %p109 = scmp.eq.s32.totalorder %s14, 1
      %p110 = por %p108, %p109
      %p111 = scmp.ne.s32.totalorder %s103, %s106
      %p112 = scmp.eq.s32.totalorder %s14, 0
      %p113 = por %p111, %p112
      %p114 = scmp.ne.s32.totalorder %s103, %s106
      %p115 = scmp.eq.s32.totalorder %s19, 1
      %p116 = por %p114, %p115
      %p117 = scmp.ne.s32.totalorder %s106, %s107
      %p118 = scmp.eq.s32.totalorder %s19, 0
      %p119 = por %p117, %p118
      %p120 = scmp.ne.s32.totalorder %s106, %s107
      %p121 = scmp.eq.s32.totalorder %s20, 1
      %p122 = por %p120, %p121
      %p124 = scmp.ne.s32.totalorder %s107, %s123
      %p125 = scmp.eq.s32.totalorder %s20, 0
      %p126 = por %p124, %p125
      %p127 = scmp.le.s32.totalorder 1, %s14
      %p128 = scmp.lt.s32.totalorder %s14, 3
      %p129 = pnand %p127, %p128
      %p130 = pneg %p129
      // Predicated region
      $region9: #{tpu_custom_call.1} parent=5 // pred_check
        _
      $region10: #{tpu_custom_call.1} parent=5 // pred_check_branch
        %132 = sbr.rel (%p129) target = $region12
      $region11: #{tpu_custom_call.1} parent=5 // pred_region
        %s133 = ssub.s32 %s14, 1
        // Predicated region
        $region13: #{tpu_custom_call.1} parent=11 // pred_check
          %p134 = pneg %p89
        $region14: #{tpu_custom_call.1} parent=11 // pred_check_branch
          %136 = sbr.rel (%p134) target = $region16
        $region15: #{tpu_custom_call.1} parent=11 // pred_region
          %p137 = scmp.lt.s32.totalorder %s24, 0
          %s138 = scalar_select %p137, %s24, 0
          %s139 = smul.addr %s138, 4
          %s140 = scalar_lea.vmem %s1, %s139
        $region16: #{tpu_custom_call.1} parent=11 // pred_fallthru
          _
      $region12: #{tpu_custom_call.1} parent=5 // pred_fallthru
        _
      %p141 = scmp.lt.s32.totalorder %s14, 2
      // Predicated region
      $region17: #{tpu_custom_call.1} parent=5 // pred_check
        %p142 = pneg %p141
      $region18: #{tpu_custom_call.1} parent=5 // pred_check_branch
        %144 = sbr.rel (%p142) target = $region20
      $region19: #{tpu_custom_call.1} parent=5 // pred_region
        // Predicated region
        $region21: #{tpu_custom_call.1} parent=19 // pred_check
          %p145 = pneg %p57
        $region22: #{tpu_custom_call.1} parent=19 // pred_check_branch
          %147 = sbr.rel (%p145) target = $region24
        $region23: #{tpu_custom_call.1} parent=19 // pred_region
          %s148 = sand.u32 %s47, 1
          %s149 = scalar_lea.sflag [#allocation3], %s148
          %s150 = sand.u32 %s47, 1
          %s151 = smul.addr %s150, 8
          %s152 = scalar_lea.vmem [#allocation2], %s151
          %s153 = smul.u32 2, %s23
          %s155 = ssub.s32 128, 128
          %156 = vsyncadd %s149, %s155
          %s157 = smul.addr %s21, 2
          %s158 = sadd.s32 %s153, %s157
          %s159 = smul.addr %s22, 2
          %s160 = sadd.s32 %s158, %s159
          %s161 = smul.addr %s160, 64
          %s162 = scalar_lea.hbm %s0, %s161
          %s164 = sshll.u32 %s152, 4
          %s165 = int_to_ptr.vmem [resolvable:$true] %s164
          %167 = dma.hbm_to_vmem [thread:$0]  %s162, 128, %s165, %s149
        $region24: #{tpu_custom_call.1} parent=19 // pred_fallthru
          _
      $region20: #{tpu_custom_call.1} parent=5 // pred_fallthru
        _
      %p168 = scmp.le.s32.totalorder 1, %s14
      %p169 = scmp.lt.s32.totalorder %s14, 3
      %p170 = pnand %p168, %p169
      %p171 = pneg %p170
      // Predicated region
      $region25: #{tpu_custom_call.1} parent=5 // pred_check
        _
      $region26: #{tpu_custom_call.1} parent=5 // pred_check_branch
        %173 = sbr.rel (%p170) target = $region28
      $region27: #{tpu_custom_call.1} parent=5 // pred_region
        %s174 = ssub.s32 %s14, 1
        %s175 = sand.u32 %s50, 1
        %s176 = scalar_lea.sflag [#allocation3], %s175
        %s177 = sand.u32 %s50, 1
        %s178 = smul.addr %s177, 8
        %s179 = scalar_lea.vmem [#allocation2], %s178
        // Predicated region
        $region29: #{tpu_custom_call.1} parent=27 // pred_check
          %p180 = pneg %p63
        $region30: #{tpu_custom_call.1} parent=27 // pred_check_branch
          %182 = sbr.rel (%p180) target = $region32
        $region31: #{tpu_custom_call.1} parent=27 // pred_region
          %183 = dma.done %s176, 128
        $region32: #{tpu_custom_call.1} parent=27 // pred_fallthru
          _
        %s184 = sand.u32 %s50, 1
        %s185 = scalar_lea.sflag [#allocation3], %s184
        %s186 = sand.u32 %s50, 1
        %s187 = smul.addr %s186, 8
        %s188 = scalar_lea.vmem [#allocation2], %s187
        %p189 = pneg %p63
        %p190 = pneg %p60
        %p191 = scmp.lt.s32.totalorder %s24, 0
        %s192 = scalar_select %p191, %s24, 0
        %s193 = smul.addr %s192, 4
        %s194 = scalar_lea.vmem %s1, %s193
        %p195 = pneg %p89
        %p196 = pneg %p86
        %p197 = pneg %p119
        %p198 = pneg %p116
        %s199 = sand.u32 %s106, 1
        %s200 = scalar_lea.sflag [#allocation4], %s199
        %s201 = sand.u32 %s106, 1
        %s202 = smul.addr %s201, 8
        %s203 = scalar_lea.vmem [#allocation5], %s202
        %s204 = smul.u32 2, %s26
        %p205 = scmp.lt.s32.totalorder %s24, 0
        %s206 = scalar_select %p205, %s24, 0
        %s207 = smul.addr %s206, 4
        %s208 = scalar_lea.vmem %s1, %s207
        %s209 = smul.u32 2, %s26
        %v210 = vld [vmem:[%s179] sm:$0xff]
        %v211 = vld [vmem:[%s208] sm:$0xf]
        %213 = vset.pattern.permute.xlu0 0
        %214 = vperm.xlu0 %213, %v211
        %v215 = vpop.permute.xlu0 %214
        %v217 = vunpack.c.l.s4 839922192
        %v218 = vunpack.c.0.s8 %v217
        %v219 = vlaneseq
        %v220 = vshrl.u32 %v219, 7
        %v221 = vsub.s32 %v218, %v220
        %v222 = vrot.slane %v215, %v221
        %v224 = vmul.f32 %v210, %v222
        %225 = vst [vmem:[%s203] sm:$0xff] %v224
        %s226 = sand.u32 %s106, 1
        %s227 = scalar_lea.sflag [#allocation4], %s226
        %s228 = sand.u32 %s106, 1
        %s229 = smul.addr %s228, 8
        %s230 = scalar_lea.vmem [#allocation5], %s229
        // Predicated region
        $region33: #{tpu_custom_call.1} parent=27 // pred_check
          %p231 = pneg %p116
        $region34: #{tpu_custom_call.1} parent=27 // pred_check_branch
          %233 = sbr.rel (%p231) target = $region36
        $region35: #{tpu_custom_call.1} parent=27 // pred_region
          %s234 = smul.u32 2, %s26
          %s236 = ssub.s32 128, 128
          %237 = vsyncadd %s227, %s236
          %s238 = smul.addr %s24, 2
          %s239 = sadd.s32 %s234, %s238
          %s240 = smul.addr %s25, 2
          %s241 = sadd.s32 %s239, %s240
          %s242 = smul.addr %s241, 64
          %s243 = scalar_lea.hbm %s2, %s242
          %s245 = sshll.u32 %s230, 4
          %s246 = int_to_ptr.vmem [resolvable:$true] %s245
          %248 = dma.vmem_to_hbm [thread:$0]  %s246, 128, %s243, %s227
        $region36: #{tpu_custom_call.1} parent=27 // pred_fallthru
          _
      $region28: #{tpu_custom_call.1} parent=5 // pred_fallthru
        _
      %p249 = scmp.le.s32.totalorder 2, %s14
      // Predicated region
      $region37: #{tpu_custom_call.1} parent=5 // pred_check
        %p250 = pneg %p249
      $region38: #{tpu_custom_call.1} parent=5 // pred_check_branch
        %252 = sbr.rel (%p250) target = $region40
      $region39: #{tpu_custom_call.1} parent=5 // pred_region
        %s253 = ssub.s32 %s14, 2
        // Predicated region
        $region41: #{tpu_custom_call.1} parent=39 // pred_check
          %p254 = pneg %p122
        $region42: #{tpu_custom_call.1} parent=39 // pred_check_branch
          %256 = sbr.rel (%p254) target = $region44
        $region43: #{tpu_custom_call.1} parent=39 // pred_region
          %s257 = sand.u32 %s107, 1
          %s258 = scalar_lea.sflag [#allocation4], %s257
          %s259 = sand.u32 %s107, 1
          %s260 = smul.addr %s259, 8
          %s261 = scalar_lea.vmem [#allocation5], %s260
          %262 = dma.done %s258, 128
        $region44: #{tpu_custom_call.1} parent=39 // pred_fallthru
          _
      $region40: #{tpu_custom_call.1} parent=5 // pred_fallthru
        _
    $region6: #{tpu_custom_call.1} parent=1 // loop_footer
      %s18 = sadd.s32 1, %s14
    $region7: #{tpu_custom_call.1} parent=1 // loop_footer_branch
      %13 = sbr.rel target = $region3
    $region8: #{tpu_custom_call.1} parent=1 // loop_exit
      _
    %263 = vsyncpa [#allocation3], 1
    %s264 = scalar_lea.sflag [#allocation3], 1
    %265 = vsyncpa %s264, 1
    %266 = vsyncpa [#allocation4], 1
    %s267 = scalar_lea.sflag [#allocation4], 1
    %268 = vsyncpa %s267, 1

</llo_original>
